<compile_context>
chip_gen: v7x
topology: tpu7x:2x2x1
jax: 0.10.0
libtpu: 0.0.40
codegen_flags: <defaults>
</compile_context>

<pallas_src>
import functools

import jax
import jax.numpy as jnp
from jax import lax
from jax.experimental import pallas as pl
from jax.experimental.pallas import tpu as pltpu


def _mha_kernel(x_ref, w_ref, b_ref, o_ref, *, n_head, d_out):
    # x_ref: (Bt, S, d_in)        native dtype
    # w_ref: (d_in, 3*H*d_out)    fused bf16 [Q_all | K_all | V_all] weights
    #                             (1/sqrt(d_out) already folded into the Q section)
    # b_ref: (1, 3*H*d_out)       fused f32 biases (Q section pre-scaled)
    # o_ref: (Bt, S, H*d_out)     concatenated head outputs
    bt, s, d_in = x_ref.shape
    hd = n_head * d_out

    # ---- Fused QKV projection: one wide MXU matmul over Bt*S rows, bf16 in, f32 acc.
    # (Bt, S, d_in) -> (Bt*S, d_in): leading-dim collapse, layout preserving (S % 8 == 0).
    x = x_ref[...].reshape(bt * s, d_in).astype(jnp.bfloat16)
    qkv = jnp.dot(x, w_ref[...], preferred_element_type=jnp.float32)
    qkv = qkv + b_ref[...].astype(jnp.float32)                     # (Bt*S, 3*hd) f32
    qkv = qkv.reshape(bt, s, 3 * hd)

    # bf16 operands for the attention matmuls; all softmax math stays f32.
    q_all = qkv[..., 0 * hd:1 * hd].astype(jnp.bfloat16)           # scale folded in
    k_all = qkv[..., 1 * hd:2 * hd].astype(jnp.bfloat16)
    v_all = qkv[..., 2 * hd:3 * hd].astype(jnp.bfloat16)

    # Causal mask, hoisted once, shared across heads and batch rows.
    row = lax.broadcasted_iota(jnp.int32, (s, s), 0)
    col = lax.broadcasted_iota(jnp.int32, (s, s), 1)
    causal = (col <= row)[None]                                    # (1, S, S)
    neg_big = jnp.float32(-1e30)

    for h in range(n_head):        # H is a small compile-time constant; static unroll
        sl = slice(h * d_out, (h + 1) * d_out)
        q = q_all[..., sl]                                         # (Bt, S, d_out) bf16
        k = k_all[..., sl]
        v = v_all[..., sl]

        # q @ k^T batched over Bt, contracting the head dim (no explicit transpose).
        scores = jnp.einsum("bqd,bkd->bqk", q, k,
                            preferred_element_type=jnp.float32)    # (Bt, S, S) f32
        scores = jnp.where(causal, scores, neg_big)

        # Numerically stable softmax in f32; denominator via EUP approx reciprocal.
        m = jnp.max(scores, axis=-1, keepdims=True)
        p = jnp.exp(scores - m)
        inv_l = pl.reciprocal(jnp.sum(p, axis=-1, keepdims=True), approx=True)

        pv = jnp.einsum("bqk,bkd->bqd", p.astype(jnp.bfloat16), v,
                        preferred_element_type=jnp.float32)        # (Bt, S, d_out) f32

        # Write this head's columns straight into the output block (no list/concat;
        # per-head live ranges stay bounded).
        o_ref[:, :, sl] = (pv * inv_l).astype(o_ref.dtype)


def _pick_batch_block(batch, seq, target_rows=256):
    """Largest divisor Bt of `batch` with Bt*seq <= target_rows (MXU row occupancy),
    while keeping >= 2 grid steps when batch >= 2 (both v7x TensorCores busy)."""
    best = 1
    for cand in range(1, batch + 1):
        if batch % cand:
            continue
        if cand * seq > target_rows:
            continue
        if batch >= 2 and batch // cand < 2:
            continue
        best = cand
    return best


def multi_head_attention_v0(x, wq, wk, wv, bq, bk, bv, *, batch_block=None):
    """x: (B, S, d_in); wq/wk/wv: (H, d_in, d_out); bq/bk/bv: (H, d_out).
    Returns (B, S, H*d_out) with head h occupying columns [h*d_out:(h+1)*d_out]."""
    B, S, d_in = x.shape
    H, _, d_out = wq.shape
    hd = H * d_out
    scale = 1.0 / (d_out ** 0.5)

    def _flat(w):                       # (H, d_in, d_out) -> (d_in, H*d_out), head-major
        return jnp.transpose(w, (1, 0, 2)).reshape(d_in, hd)

    # Fold 1/sqrt(d_out) into the Q weights/bias (zero in-kernel cost), fuse Q|K|V into
    # a single (d_in, 3*hd) matrix, and cast weights to bf16 once on the host so the
    # MXU runs native bf16 and the grid-invariant weight block is half the VMEM.
    w_fused = jnp.concatenate([_flat(wq) * scale, _flat(wk), _flat(wv)],
                              axis=-1).astype(jnp.bfloat16)
    b_fused = jnp.concatenate([bq.reshape(1, hd) * scale,
                               bk.reshape(1, hd),
                               bv.reshape(1, hd)], axis=-1).astype(jnp.float32)

    Bt = batch_block or _pick_batch_block(B, S)
    assert B % Bt == 0, (B, Bt)

    kernel = functools.partial(_mha_kernel, n_head=H, d_out=d_out)

    return pl.pallas_call(
        kernel,
        out_shape=jax.ShapeDtypeStruct((B, S, hd), x.dtype),
        grid_spec=pltpu.PrefetchScalarGridSpec(
            num_scalar_prefetch=0,
            grid=(pl.cdiv(B, Bt),),
            in_specs=[
                pl.BlockSpec((Bt, S, d_in), lambda b: (b, 0, 0)),   # Bt batch rows / step
                pl.BlockSpec((d_in, 3 * hd), lambda b: (0, 0)),     # fused W (grid-invariant)
                pl.BlockSpec((1, 3 * hd), lambda b: (0, 0)),        # fused bias
            ],
            out_specs=pl.BlockSpec((Bt, S, hd), lambda b: (b, 0, 0)),
        ),
        compiler_params=pltpu.CompilerParams(
            dimension_semantics=("parallel",)),
    )(x, w_fused, b_fused)


def _reference(x, wq, wk, wv, bq, bk, bv):
    # Pure-JAX f32 reference (same math as CausalAttention per head, concat over heads).
    B, S, d_in = x.shape
    H, _, d_out = wq.shape
    outs = []
    for h in range(H):
        q = x @ wq[h] + bq[h]
        k = x @ wk[h] + bk[h]
        v = x @ wv[h] + bv[h]
        scores = jnp.einsum("bqd,bkd->bqk", q, k) / jnp.sqrt(jnp.float32(d_out))
        mask = jnp.tril(jnp.ones((S, S), dtype=bool))
        scores = jnp.where(mask[None], scores, -jnp.inf)
        attn = jax.nn.softmax(scores, axis=-1)
        outs.append(jnp.einsum("bqk,bkd->bqd", attn, v))
    return jnp.concatenate(outs, axis=-1)


if __name__ == "__main__":
    # Small deterministic setup consistent with the module's constructor:
    # d_in=16, d_out=8, context_length=seq=8, qkv_bias=True, n_head=2, batch=2
    B, S, d_in, d_out, n_head = 2, 8, 16, 8, 2

    key = jax.random.PRNGKey(0)
    kx, kq, kk, kv, kbq, kbk, kbv = jax.random.split(key, 7)

    x = jax.random.normal(kx, (B, S, d_in), dtype=jnp.float32)
    bound = 1.0 / jnp.sqrt(jnp.float32(d_in))
    wq = jax.random.uniform(kq, (n_head, d_in, d_out), jnp.float32, -bound, bound)
    wk = jax.random.uniform(kk, (n_head, d_in, d_out), jnp.float32, -bound, bound)
    wv = jax.random.uniform(kv, (n_head, d_in, d_out), jnp.float32, -bound, bound)
    bq = jax.random.uniform(kbq, (n_head, d_out), jnp.float32, -bound, bound)
    bk = jax.random.uniform(kbk, (n_head, d_out), jnp.float32, -bound, bound)
    bv = jax.random.uniform(kbv, (n_head, d_out), jnp.float32, -bound, bound)

    out = multi_head_attention_v0(x, wq, wk, wv, bq, bk, bv)
    out = jax.block_until_ready(out)

    ref = _reference(x, wq, wk, wv, bq, bk, bv)
    assert out.shape == (B, S, n_head * d_out), out.shape
    # Tolerance covers bf16 MXU operands + pl.reciprocal(approx=True) in the softmax
    # denominator (inference-grade precision; use f32 operands / exact divide for training).
    assert jnp.allclose(out, ref, atol=2e-2, rtol=2e-2), "mismatch vs reference"

    print("KERNEL_OK")
</pallas_src>

<mosaic_0001>
module attributes {stable_mosaic.version = 11 : i64} {
  func.func @_mha_kernel(%arg0: i32, %arg1: memref<1x8x16xf32, #tpu.memory_space<vmem>>, %arg2: memref<16x48xbf16, #tpu.memory_space<vmem>>, %arg3: memref<1x48xf32, #tpu.memory_space<vmem>>, %arg4: memref<1x8x16xf32, #tpu.memory_space<vmem>>) attributes {dimension_semantics = [#tpu.dimension_semantics<parallel>], iteration_bounds = array<i64: 2>, scalar_prefetch = 0 : i64, scratch_operands = 0 : i64, tpu.core_type = #tpu.core_type<tc>, window_params = [{transform_indices = @transform_0, window_bounds = array<i64: 1, 8, 16>}, {pipeline_mode = #tpu.pipeline_mode<synchronous>, transform_indices = @transform_1, window_bounds = array<i64: 16, 48>}, {pipeline_mode = #tpu.pipeline_mode<synchronous>, transform_indices = @transform_2, window_bounds = array<i64: 1, 48>}, {transform_indices = @transform_3, window_bounds = array<i64: 1, 8, 16>}]} {
    %c0 = arith.constant 0 : index
    %c0_0 = arith.constant 0 : index
    %c0_1 = arith.constant 0 : index
    %0 = vector.load %arg1[%c0, %c0_0, %c0_1] : memref<1x8x16xf32, #tpu.memory_space<vmem>>, vector<1x8x16xf32>
    %1 = vector.shape_cast %0 : vector<1x8x16xf32> to vector<8x16xf32>
    %2 = arith.truncf %1 : vector<8x16xf32> to vector<8x16xbf16>
    %c0_2 = arith.constant 0 : index
    %c0_3 = arith.constant 0 : index
    %3 = vector.load %arg2[%c0_2, %c0_3] : memref<16x48xbf16, #tpu.memory_space<vmem>>, vector<16x48xbf16>
    %cst = arith.constant dense<0.000000e+00> : vector<8x48xf32>
    %4 = tpu.matmul %2, %3, %cst {dimension_numbers = #tpu.dot_dimension_numbers<[1], [0], [0], [1], [0, 0, 1, 1], [], []>} : vector<8x16xbf16>, vector<16x48xbf16>, vector<8x48xf32> -> vector<8x48xf32>
    %c0_4 = arith.constant 0 : index
    %c0_5 = arith.constant 0 : index
    %5 = vector.load %arg3[%c0_4, %c0_5] : memref<1x48xf32, #tpu.memory_space<vmem>>, vector<1x48xf32>
    %6 = vector.broadcast %5 : vector<1x48xf32> to vector<8x48xf32>
    %7 = arith.addf %4, %6 : vector<8x48xf32>
    %8 = vector.shape_cast %7 : vector<8x48xf32> to vector<1x8x48xf32>
    %9 = vector.extract_strided_slice %8 {offsets = [0, 0, 0], sizes = [1, 8, 16], strides = [1, 1, 1]} : vector<1x8x48xf32> to vector<1x8x16xf32>
    %10 = arith.truncf %9 : vector<1x8x16xf32> to vector<1x8x16xbf16>
    %11 = vector.extract_strided_slice %8 {offsets = [0, 0, 16], sizes = [1, 8, 16], strides = [1, 1, 1]} : vector<1x8x48xf32> to vector<1x8x16xf32>
    %12 = arith.truncf %11 : vector<1x8x16xf32> to vector<1x8x16xbf16>
    %13 = vector.extract_strided_slice %8 {offsets = [0, 0, 32], sizes = [1, 8, 16], strides = [1, 1, 1]} : vector<1x8x48xf32> to vector<1x8x16xf32>
    %14 = arith.truncf %13 : vector<1x8x16xf32> to vector<1x8x16xbf16>
    %15 = tpu.iota {dimensions = array<i32: 0>} : vector<8x8xi32>
    %16 = tpu.iota {dimensions = array<i32: 1>} : vector<8x8xi32>
    %17 = arith.cmpi sle, %16, %15 : vector<8x8xi32>
    %18 = vector.shape_cast %17 : vector<8x8xi1> to vector<1x8x8xi1>
    %19 = vector.extract_strided_slice %10 {offsets = [0, 0, 0], sizes = [1, 8, 8], strides = [1, 1, 1]} : vector<1x8x16xbf16> to vector<1x8x8xbf16>
    %20 = vector.extract_strided_slice %12 {offsets = [0, 0, 0], sizes = [1, 8, 8], strides = [1, 1, 1]} : vector<1x8x16xbf16> to vector<1x8x8xbf16>
    %21 = vector.extract_strided_slice %14 {offsets = [0, 0, 0], sizes = [1, 8, 8], strides = [1, 1, 1]} : vector<1x8x16xbf16> to vector<1x8x8xbf16>
    "tpu.trace_start"() <{level = 10 : i32, message = "bqd,bkd->bqk"}> : () -> ()
    %cst_6 = arith.constant dense<0.000000e+00> : vector<1x8x8xf32>
    %22 = tpu.matmul %19, %20, %cst_6 {dimension_numbers = #tpu.dot_dimension_numbers<[2], [2], [1], [1], [0, 0, 0, 1, 1, 1], [0], [0]>} : vector<1x8x8xbf16>, vector<1x8x8xbf16>, vector<1x8x8xf32> -> vector<1x8x8xf32>
    %cst_7 = arith.constant -1.000000e+30 : f32
    "tpu.trace_stop"() : () -> ()
    %23 = vector.broadcast %cst_7 : f32 to vector<1x8x8xf32>
    %24 = arith.select %18, %22, %23 : vector<1x8x8xi1>, vector<1x8x8xf32>
    %cst_8 = arith.constant dense<0xFF800000> : vector<1x8xf32>
    %25 = vector.multi_reduction <maximumf>, %24, %cst_8 [2] : vector<1x8x8xf32> to vector<1x8xf32>
    %26 = vector.shape_cast %25 : vector<1x8xf32> to vector<1x8x1xf32>
    %27 = vector.broadcast %26 : vector<1x8x1xf32> to vector<1x8x8xf32>
    %28 = arith.subf %24, %27 : vector<1x8x8xf32>
    %29 = math.exp %28 : vector<1x8x8xf32>
    %cst_9 = arith.constant dense<0.000000e+00> : vector<1x8xf32>
    %30 = vector.multi_reduction <add>, %29, %cst_9 [2] : vector<1x8x8xf32> to vector<1x8xf32>
    %31 = vector.shape_cast %30 : vector<1x8xf32> to vector<1x8x1xf32>
    %32 = tpu.reciprocal %31 {approx = true} : vector<1x8x1xf32> -> vector<1x8x1xf32>
    %33 = arith.truncf %29 : vector<1x8x8xf32> to vector<1x8x8xbf16>
    "tpu.trace_start"() <{level = 10 : i32, message = "bqk,bkd->bqd"}> : () -> ()
    %cst_10 = arith.constant dense<0.000000e+00> : vector<1x8x8xf32>
    %34 = tpu.matmul %33, %21, %cst_10 {dimension_numbers = #tpu.dot_dimension_numbers<[2], [1], [1], [2], [0, 0, 0, 1, 1, 2], [0], [0]>} : vector<1x8x8xbf16>, vector<1x8x8xbf16>, vector<1x8x8xf32> -> vector<1x8x8xf32>
    "tpu.trace_stop"() : () -> ()
    %35 = vector.broadcast %32 : vector<1x8x1xf32> to vector<1x8x8xf32>
    %36 = arith.mulf %34, %35 : vector<1x8x8xf32>
    %c0_11 = arith.constant 0 : index
    %c0_12 = arith.constant 0 : index
    %c0_13 = arith.constant 0 : index
    %37 = vector.load %arg4[%c0_11, %c0_12, %c0_13] : memref<1x8x16xf32, #tpu.memory_space<vmem>>, vector<1x8x8xf32>
    tpu.vector_store %arg4[%c0_11, %c0_12, %c0_13], %36 {strides = array<i32>} : memref<1x8x16xf32, #tpu.memory_space<vmem>>, vector<1x8x8xf32>,
    %38 = vector.extract_strided_slice %10 {offsets = [0, 0, 8], sizes = [1, 8, 8], strides = [1, 1, 1]} : vector<1x8x16xbf16> to vector<1x8x8xbf16>
    %39 = vector.extract_strided_slice %12 {offsets = [0, 0, 8], sizes = [1, 8, 8], strides = [1, 1, 1]} : vector<1x8x16xbf16> to vector<1x8x8xbf16>
    %40 = vector.extract_strided_slice %14 {offsets = [0, 0, 8], sizes = [1, 8, 8], strides = [1, 1, 1]} : vector<1x8x16xbf16> to vector<1x8x8xbf16>
    "tpu.trace_start"() <{level = 10 : i32, message = "bqd,bkd->bqk"}> : () -> ()
    %cst_14 = arith.constant dense<0.000000e+00> : vector<1x8x8xf32>
    %41 = tpu.matmul %38, %39, %cst_14 {dimension_numbers = #tpu.dot_dimension_numbers<[2], [2], [1], [1], [0, 0, 0, 1, 1, 1], [0], [0]>} : vector<1x8x8xbf16>, vector<1x8x8xbf16>, vector<1x8x8xf32> -> vector<1x8x8xf32>
    %cst_15 = arith.constant -1.000000e+30 : f32
    "tpu.trace_stop"() : () -> ()
    %42 = vector.broadcast %cst_15 : f32 to vector<1x8x8xf32>
    %43 = arith.select %18, %41, %42 : vector<1x8x8xi1>, vector<1x8x8xf32>
    %cst_16 = arith.constant dense<0xFF800000> : vector<1x8xf32>
    %44 = vector.multi_reduction <maximumf>, %43, %cst_16 [2] : vector<1x8x8xf32> to vector<1x8xf32>
    %45 = vector.shape_cast %44 : vector<1x8xf32> to vector<1x8x1xf32>
    %46 = vector.broadcast %45 : vector<1x8x1xf32> to vector<1x8x8xf32>
    %47 = arith.subf %43, %46 : vector<1x8x8xf32>
    %48 = math.exp %47 : vector<1x8x8xf32>
    %cst_17 = arith.constant dense<0.000000e+00> : vector<1x8xf32>
    %49 = vector.multi_reduction <add>, %48, %cst_17 [2] : vector<1x8x8xf32> to vector<1x8xf32>
    %50 = vector.shape_cast %49 : vector<1x8xf32> to vector<1x8x1xf32>
    %51 = tpu.reciprocal %50 {approx = true} : vector<1x8x1xf32> -> vector<1x8x1xf32>
    %52 = arith.truncf %48 : vector<1x8x8xf32> to vector<1x8x8xbf16>
    "tpu.trace_start"() <{level = 10 : i32, message = "bqk,bkd->bqd"}> : () -> ()
    %cst_18 = arith.constant dense<0.000000e+00> : vector<1x8x8xf32>
    %53 = tpu.matmul %52, %40, %cst_18 {dimension_numbers = #tpu.dot_dimension_numbers<[2], [1], [1], [2], [0, 0, 0, 1, 1, 2], [0], [0]>} : vector<1x8x8xbf16>, vector<1x8x8xbf16>, vector<1x8x8xf32> -> vector<1x8x8xf32>
    "tpu.trace_stop"() : () -> ()
    %54 = vector.broadcast %51 : vector<1x8x1xf32> to vector<1x8x8xf32>
    %55 = arith.mulf %53, %54 : vector<1x8x8xf32>
    %c0_19 = arith.constant 0 : index
    %c0_20 = arith.constant 0 : index
    %c8 = arith.constant 8 : index
    %56 = vector.load %arg4[%c0_19, %c0_20, %c8] : memref<1x8x16xf32, #tpu.memory_space<vmem>>, vector<1x8x8xf32>
    tpu.vector_store %arg4[%c0_19, %c0_20, %c8], %55 {strides = array<i32>} : memref<1x8x16xf32, #tpu.memory_space<vmem>>, vector<1x8x8xf32>,
    return
  }
  func.func @transform_0(%arg0: i32) -> (i32, i32, i32) {
    %c0_i32 = arith.constant 0 : i32
    %c0_i32_0 = arith.constant 0 : i32
    %c0_i32_1 = arith.constant 0 : i32
    return %arg0, %c0_i32, %c0_i32_0 : i32, i32, i32
  }
  func.func @transform_1(%arg0: i32) -> (i32, i32) {
    %c0_i32 = arith.constant 0 : i32
    %c0_i32_0 = arith.constant 0 : i32
    %c0_i32_1 = arith.constant 0 : i32
    return %c0_i32, %c0_i32_0 : i32, i32
  }
  func.func @transform_2(%arg0: i32) -> (i32, i32) {
    %c0_i32 = arith.constant 0 : i32
    %c0_i32_0 = arith.constant 0 : i32
    %c0_i32_1 = arith.constant 0 : i32
    return %c0_i32, %c0_i32_0 : i32, i32
  }
  func.func @transform_3(%arg0: i32) -> (i32, i32, i32) {
    %c0_i32 = arith.constant 0 : i32
    %c0_i32_0 = arith.constant 0 : i32
    %c0_i32_1 = arith.constant 0 : i32
    return %arg0, %c0_i32, %c0_i32_0 : i32, i32, i32
  }
}

</mosaic_0001>

<llo_original>
// kernel: tpu_custom_call.1
$region0: #{tpu_custom_call.1}
  #allocation0 [shape = 'u32[]', space=smem, size = 0x4, offset = 0x4, fixed_abs, tag = 'smem constant byte address 0x4 - core index']
  #allocation1 [shape = 'u32[144,128]{1,0:T(1,128)}', space=vmem, size = 0x12000, scoped, tag = 'internal scratch']
  %s0 = inlined_call_operand.hbm [shape: f32[2,8,16], index: 0, kind: input, shape index: {}]
  %s1 = inlined_call_operand.hbm [shape: bf16[16,48], index: 1, kind: input, shape index: {}]
  %s2 = inlined_call_operand.vmem [shape: f32[1,48], index: 2, kind: input, shape index: {}]
  %s3 = inlined_call_operand.hbm [shape: f32[2,8,16], index: 3, kind: output, shape index: {}]
  %s4 = sld [smem:[#allocation0]]
  $region53: #{tpu_custom_call.1} parent=0
    _
  %s6 = ssub.s32 1, %s4
  %s7 = scalar_select 0, %s6, %s4
  $region1: #{tpu_custom_call.1} parent=0
    #allocation2 [shape = 'u8[8192]{0}', space=vmem, size = 0x2000, scoped, tag = 'input window, operand 0']
    #allocation3 [shape = 's32[2]{0}', space=sflag, size = 0x8, scoped, tag = 'scoped memory for tpu_custom_call.1']
    #allocation4 [shape = 's32[2]{0}', space=sflag, size = 0x8, scoped, tag = 'scoped memory for tpu_custom_call.1']
    #allocation5 [shape = 'u8[4096]{0}', space=vmem, size = 0x1000, scoped, tag = 'input window, operand 1, single buffered']
    #allocation6 [shape = 's32[1]{0}', space=sflag, size = 0x4, scoped, tag = 'scoped memory for tpu_custom_call.1']
    #allocation7 [shape = 'u8[8192]{0}', space=vmem, size = 0x2000, scoped, tag = 'output window, operand 0']
    %8 = vsyncpa [#allocation3], 0
    %s9 = scalar_lea.sflag [#allocation3], 1
    %10 = vsyncpa %s9, 0
    %11 = vsyncpa [#allocation6], 0
    %12 = vsyncpa [#allocation4], 0
    %s13 = scalar_lea.sflag [#allocation4], 1
    %14 = vsyncpa %s13, 0
    loop: start=0, step=1, limit=4
    $region2: #{tpu_custom_call.1} parent=1 // loop_pre_header
      _
    $region3: #{tpu_custom_call.1} parent=1 // loop_header
      %s16 = sphi 0, %s20
      %p17 = scmp.ge.s32.totalorder %s16, 4
      %s26 = sphi 0, %s28
      %s29 = sphi 0, %s26
      %s30 = sphi 0, %s29
      %s46 = sphi 0, %s30
      %s50 = sphi 0, %s50
      %s52 = sphi 0, %s50
      %s53 = sphi 0, %s52
      %s67 = sphi 0, %s53
      %s71 = sphi 0, %s71
      %s73 = sphi 0, %s71
      %s74 = sphi 0, %s73
      %s88 = sphi 0, %s74
      %s94 = sphi 0, %s96
      %s97 = sphi 0, %s94
      %s98 = sphi 0, %s97
      %s114 = sphi 0, %s98
    $region4: #{tpu_custom_call.1} parent=1 // loop_header_branch
      %19 = sbr.rel (%p17) target = $region8
    $region5: #{tpu_custom_call.1} parent=1 // loop_body
      %s21 = ssub.s32 %s16, 1
      %s22 = ssub.s32 %s16, 2
      %s23 = sadd.s32 %s16, 1
      %s24 = ssub.s32 %s16, %s23
      %p25 = scmp.eq.s32.totalorder %s24, 0
      %s27 = sadd.s32 %s26, 1
      %s28 = scalar_select %p25, %s26, %s27
      %p31 = pneg %p25
      %p32 = scmp.eq.s32.totalorder %s16, 1
      %p33 = por %p31, %p32
      %p34 = scmp.ne.s32.totalorder %s26, %s29
      %p35 = scmp.eq.s32.totalorder %s16, 0
      %p36 = por %p34, %p35
      %p37 = scmp.ne.s32.totalorder %s26, %s29
      %p38 = scmp.eq.s32.totalorder %s21, 1
      %p39 = por %p37, %p38
      %p40 = scmp.ne.s32.totalorder %s29, %s30
      %p41 = scmp.eq.s32.totalorder %s21, 0
      %p42 = por %p40, %p41
      %p43 = scmp.ne.s32.totalorder %s29, %s30
      %p44 = scmp.eq.s32.totalorder %s22, 1
      %p45 = por %p43, %p44
      %p47 = scmp.ne.s32.totalorder %s30, %s46
      %p48 = scmp.eq.s32.totalorder %s22, 0
      %p49 = por %p47, %p48
      %s51 = sadd.s32 %s50, 1
      %p54 = scmp.eq.s32.totalorder %s16, 1
      %p55 = scmp.ne.s32.totalorder %s50, %s52
      %p56 = scmp.eq.s32.totalorder %s16, 0
      %p57 = por %p55, %p56
      %p58 = scmp.ne.s32.totalorder %s50, %s52
      %p59 = scmp.eq.s32.totalorder %s21, 1
      %p60 = por %p58, %p59
      %p61 = scmp.ne.s32.totalorder %s52, %s53
      %p62 = scmp.eq.s32.totalorder %s21, 0
      %p63 = por %p61, %p62
      %p64 = scmp.ne.s32.totalorder %s52, %s53
      %p65 = scmp.eq.s32.totalorder %s22, 1
      %p66 = por %p64, %p65
      %p68 = scmp.ne.s32.totalorder %s53, %s67
      %p69 = scmp.eq.s32.totalorder %s22, 0
      %p70 = por %p68, %p69
      %s72 = sadd.s32 %s71, 1
      %p75 = scmp.eq.s32.totalorder %s16, 1
      %p76 = scmp.ne.s32.totalorder %s71, %s73
      %p77 = scmp.eq.s32.totalorder %s16, 0
      %p78 = por %p76, %p77
      %p79 = scmp.ne.s32.totalorder %s71, %s73
      %p80 = scmp.eq.s32.totalorder %s21, 1
      %p81 = por %p79, %p80
      %p82 = scmp.ne.s32.totalorder %s73, %s74
      %p83 = scmp.eq.s32.totalorder %s21, 0
      %p84 = por %p82, %p83
      %p85 = scmp.ne.s32.totalorder %s73, %s74
      %p86 = scmp.eq.s32.totalorder %s22, 1
      %p87 = por %p85, %p86
      %p89 = scmp.ne.s32.totalorder %s74, %s88
      %p90 = scmp.eq.s32.totalorder %s22, 0
      %p91 = por %p89, %p90
      %s92 = ssub.s32 %s16, %s23
      %p93 = scmp.eq.s32.totalorder %s92, 0
      %s95 = sadd.s32 %s94, 1
      %s96 = scalar_select %p93, %s94, %s95
      %p99 = pneg %p93
      %p100 = scmp.eq.s32.totalorder %s16, 1
      %p101 = por %p99, %p100
      %p102 = scmp.ne.s32.totalorder %s94, %s97
      %p103 = scmp.eq.s32.totalorder %s16, 0
      %p104 = por %p102, %p103
      %p105 = scmp.ne.s32.totalorder %s94, %s97
      %p106 = scmp.eq.s32.totalorder %s21, 1
      %p107 = por %p105, %p106
      %p108 = scmp.ne.s32.totalorder %s97, %s98
      %p109 = scmp.eq.s32.totalorder %s21, 0
      %p110 = por %p108, %p109
      %p111 = scmp.ne.s32.totalorder %s97, %s98
      %p112 = scmp.eq.s32.totalorder %s22, 1
      %p113 = por %p111, %p112
      %p115 = scmp.ne.s32.totalorder %s98, %s114
      %p116 = scmp.eq.s32.totalorder %s22, 0
      %p117 = por %p115, %p116
      %p118 = scmp.le.s32.totalorder 1, %s16
      %p119 = scmp.lt.s32.totalorder %s16, 3
      %p120 = pnand %p118, %p119
      %p121 = pneg %p120
      // Predicated region
      $region9: #{tpu_custom_call.1} parent=5 // pred_check
        _
      $region10: #{tpu_custom_call.1} parent=5 // pred_check_branch
        %123 = sbr.rel (%p120) target = $region12
      $region11: #{tpu_custom_call.1} parent=5 // pred_region
        %s124 = ssub.s32 %s16, 1
        // Predicated region
        $region13: #{tpu_custom_call.1} parent=11 // pred_check
          %p125 = pneg %p63
        $region14: #{tpu_custom_call.1} parent=11 // pred_check_branch
          %127 = sbr.rel (%p125) target = $region16
        $region15: #{tpu_custom_call.1} parent=11 // pred_region
          %s129 = ssub.s32 128, 128
          %130 = vsyncadd [#allocation6], %s129
          %s131 = sshll.u32 [#allocation5], 4
          %s132 = int_to_ptr.vmem [resolvable:$true] %s131
          %137 = dma.hbm_to_vmem [thread:$0]  %s1, 128, %s132, [#allocation6], 64, 64, 4
        $region16: #{tpu_custom_call.1} parent=11 // pred_fallthru
          _
        // Predicated region
        $region17: #{tpu_custom_call.1} parent=11 // pred_check
          %p138 = pneg %p84
        $region18: #{tpu_custom_call.1} parent=11 // pred_check_branch
          %140 = sbr.rel (%p138) target = $region20
        $region19: #{tpu_custom_call.1} parent=11 // pred_region
          _
        $region20: #{tpu_custom_call.1} parent=11 // pred_fallthru
          _
      $region12: #{tpu_custom_call.1} parent=5 // pred_fallthru
        _
      %p141 = scmp.lt.s32.totalorder %s16, 2
      // Predicated region
      $region21: #{tpu_custom_call.1} parent=5 // pred_check
        %p142 = pneg %p141
      $region22: #{tpu_custom_call.1} parent=5 // pred_check_branch
        %144 = sbr.rel (%p142) target = $region24
      $region23: #{tpu_custom_call.1} parent=5 // pred_region
        // Predicated region
        $region25: #{tpu_custom_call.1} parent=23 // pred_check
          %p145 = pneg %p36
        $region26: #{tpu_custom_call.1} parent=23 // pred_check_branch
          %147 = sbr.rel (%p145) target = $region28
        $region27: #{tpu_custom_call.1} parent=23 // pred_region
          %s148 = sand.u32 %s26, 1
          %s149 = scalar_lea.sflag [#allocation3], %s148
          %s150 = sand.u32 %s26, 1
          %s151 = smul.addr %s150, 8
          %s152 = scalar_lea.vmem [#allocation2], %s151
          %s154 = ssub.s32 128, 128
          %155 = vsyncadd %s149, %s154
          %s156 = smul.addr %s16, 128
          %s157 = scalar_lea.hbm %s0, %s156
          %s159 = sshll.u32 %s152, 4
          %s160 = int_to_ptr.vmem [resolvable:$true] %s159
          %162 = dma.hbm_to_vmem [thread:$0]  %s157, 128, %s160, %s149
        $region28: #{tpu_custom_call.1} parent=23 // pred_fallthru
          _
      $region24: #{tpu_custom_call.1} parent=5 // pred_fallthru
        _
      %p163 = scmp.le.s32.totalorder 1, %s16
      %p164 = scmp.lt.s32.totalorder %s16, 3
      %p165 = pnand %p163, %p164
      %p166 = pneg %p165
      // Predicated region
      $region29: #{tpu_custom_call.1} parent=5 // pred_check
        _
      $region30: #{tpu_custom_call.1} parent=5 // pred_check_branch
        %168 = sbr.rel (%p165) target = $region32
      $region31: #{tpu_custom_call.1} parent=5 // pred_region
        %s169 = ssub.s32 %s16, 1
        %s170 = sand.u32 %s29, 1
        %s171 = scalar_lea.sflag [#allocation3], %s170
        %s172 = sand.u32 %s29, 1
        %s173 = smul.addr %s172, 8
        %s174 = scalar_lea.vmem [#allocation2], %s173
        // Predicated region
        $region33: #{tpu_custom_call.1} parent=31 // pred_check
          %p175 = pneg %p42
        $region34: #{tpu_custom_call.1} parent=31 // pred_check_branch
          %177 = sbr.rel (%p175) target = $region36
        $region35: #{tpu_custom_call.1} parent=31 // pred_region
          %178 = dma.done %s171, 128
        $region36: #{tpu_custom_call.1} parent=31 // pred_fallthru
          _
        // Predicated region
        $region37: #{tpu_custom_call.1} parent=31 // pred_check
          %p179 = pneg %p63
        $region38: #{tpu_custom_call.1} parent=31 // pred_check_branch
          %181 = sbr.rel (%p179) target = $region40
        $region39: #{tpu_custom_call.1} parent=31 // pred_region
          %182 = dma.done [#allocation6], 128
        $region40: #{tpu_custom_call.1} parent=31 // pred_fallthru
          _
        %s183 = sand.u32 %s29, 1
        %s184 = scalar_lea.sflag [#allocation3], %s183
        %s185 = sand.u32 %s29, 1
        %s186 = smul.addr %s185, 8
        %s187 = scalar_lea.vmem [#allocation2], %s186
        %p188 = pneg %p42
        %p189 = pneg %p39
        %p190 = pneg %p63
        %p191 = pneg %p60
        %p192 = pneg %p84
        %p193 = pneg %p81
        %p194 = pneg %p110
        %p195 = pneg %p107
        %s196 = sand.u32 %s97, 1
        %s197 = scalar_lea.sflag [#allocation4], %s196
        %s198 = sand.u32 %s97, 1
        %s199 = smul.addr %s198, 8
        %s200 = scalar_lea.vmem [#allocation7], %s199
        %v202 = vld [vmem:[%s174] sm:$0xff]
        %v203 = vpack.c.bf16 %v202, %v202
        %v204 = vld [vmem:[#allocation5] sm:$0xf]
        %v205 = vld [vmem:[#allocation5 + $0x4] sm:$0xf]
        %v206 = vld [vmem:[%s2] sm:$0x1]
        %v208 = vlaneseq
        %v209 = vshrl.u32 %v208, 7
        %v210 = vsub.s32 0, %v209
        %v211 = vrot.slane %v206, %v210
        %v215 = vunpack.c.l.b16 %v204
        %v216 = vunpack.c.l.b16 %v205
        %v217 = vpack.c.b16 %v216, %v215
        %vm219 = vcmask 130048
        %v221 = vsel %vm219, %v203, 0
        %223 = vmatprep.subr.bf16.mxu0 0
        %224 = vmatpush1.bf16.msra.mxu0 %v217
        %225 = vmatprep.subr.bf16.mxu0 0
        %226 = vmatpush1.bf16.msra.mxu0 0
        %227 = vmatprep.subr.bf16.mxu0 0
        %228 = vmatpush1.bf16.msra.mxu0 0
        %229 = vmatprep.subr.bf16.mxu0 0
        %230 = vmatpush1.bf16.msra.mxu0 0
        %231 = vmatprep.subr.bf16.mxu0 0
        %232 = vmatpush1.bf16.msra.mxu0 0
        %233 = vmatprep.subr.bf16.mxu0 0
        %234 = vmatpush1.bf16.msra.mxu0 0
        %235 = vmatprep.subr.bf16.mxu0 0
        %236 = vmatpush1.bf16.msra.mxu0 0
        %237 = vmatprep.subr.bf16.mxu0 0
        %238 = vmatpush1.bf16.msra.mxu0 0
        %239 = vmatprep.subr.bf16.mxu0 0
        %240 = vmatpush1.bf16.msra.mxu0 0
        %241 = vmatprep.subr.bf16.mxu0 0
        %242 = vmatpush1.bf16.msra.mxu0 0
        %243 = vmatprep.subr.bf16.mxu0 0
        %244 = vmatpush1.bf16.msra.mxu0 0
        %245 = vmatprep.subr.bf16.mxu0 0
        %246 = vmatpush1.bf16.msra.mxu0 0
        %247 = vmatprep.subr.bf16.mxu0 0
        %248 = vmatpush1.bf16.msra.mxu0 0
        %249 = vmatprep.subr.bf16.mxu0 0
        %250 = vmatpush1.bf16.msra.mxu0 0
        %251 = vmatprep.subr.bf16.mxu0 0
        %252 = vmatpush1.bf16.msra.mxu0 0
        %253 = vmatprep.subr.bf16.mxu0 0
        %254 = vmatpush1.bf16.msra.mxu0 0
        %255 = vmatprep.mubr.bf16.mxu0 0
        %256 = vmatmul.mubr.bf16.gmra.mrb[0].mxu0 %v221
        %v257 = vpop.f32.mrb[0].mxu0
        %v258 = vadd.f32 %v211, %v257
        %v259 = vpop.f32.mrb[0].mxu0
        %v260 = vpop.f32.mrb[0].mxu0
        %v261 = vpop.f32.mrb[0].mxu0
        %262 = vdwg.mxu0
        %v263 = vpack.c.bf16 %v258, %v258
        %v264 = vlaneseq
        %v265 = vshrl.u32 %v264, 7
        %v266 = vlaneseq
        %v267 = vand.u32 %v266, 127
        %vm268 = vcmp.le.s32.totalorder %v267, %v265
        %270 = vrot.lane.b32.xlu0 %v263, 112
        %v271 = vpop.permute.xlu0 %270
        %vm272 = vcmask 64512
        %v274 = vsel %vm272, %v263, 0
        %v277 = vsel %vm272, %v271, 0
        %279 = vmatprep.subr.bf16.mxu0 0
        %280 = vmatpush1.bf16.xpose.msra.mxu0 %v277
        %281 = vmatprep.subr.bf16.mxu0 0
        %282 = vmatpush1.bf16.xpose.msra.mxu0 0
        %283 = vmatprep.subr.bf16.mxu0 0
        %284 = vmatpush1.bf16.xpose.msra.mxu0 0
        %285 = vmatprep.subr.bf16.mxu0 0
        %286 = vmatpush1.bf16.xpose.msra.mxu0 0
        %287 = vmatprep.subr.bf16.mxu0 0
        %288 = vmatpush1.bf16.xpose.msra.mxu0 0
        %289 = vmatprep.subr.bf16.mxu0 0
        %290 = vmatpush1.bf16.xpose.msra.mxu0 0
        %291 = vmatprep.subr.bf16.mxu0 0
        %292 = vmatpush1.bf16.xpose.msra.mxu0 0
        %293 = vmatprep.subr.bf16.mxu0 0
        %294 = vmatpush1.bf16.xpose.msra.mxu0 0
        %295 = vmatprep.subr.bf16.mxu0 0
        %296 = vmatpush1.bf16.xpose.msra.mxu0 0
        %297 = vmatprep.subr.bf16.mxu0 0
        %298 = vmatpush1.bf16.xpose.msra.mxu0 0
        %299 = vmatprep.subr.bf16.mxu0 0
        %300 = vmatpush1.bf16.xpose.msra.mxu0 0
        %301 = vmatprep.subr.bf16.mxu0 0
        %302 = vmatpush1.bf16.xpose.msra.mxu0 0
        %303 = vmatprep.subr.bf16.mxu0 0
        %304 = vmatpush1.bf16.xpose.msra.mxu0 0
        %305 = vmatprep.subr.bf16.mxu0 0
        %306 = vmatpush1.bf16.xpose.msra.mxu0 0
        %307 = vmatprep.subr.bf16.mxu0 0
        %308 = vmatpush1.bf16.xpose.msra.mxu0 0
        %309 = vmatprep.subr.bf16.mxu0 0
        %310 = vmatpush1.bf16.xpose.msra.mxu0 0
        %311 = vmatprep.mubr.bf16.mxu0 0
        %312 = vmatmul.mubr.bf16.gmra.mrb[0].mxu0 %v274
        %v313 = vpop.f32.mrb[0].mxu0
        %v314 = vadd.f32 0.0, %v313
        %v315 = vpop.f32.mrb[0].mxu0
        %v316 = vpop.f32.mrb[0].mxu0
        %v317 = vpop.f32.mrb[0].mxu0
        %318 = vdwg.mxu0
        %v319 = vsel %vm268, %v314, -1e+30
        %v320 = vsel %vm272, %v319, -inf
        %321 = vmax.xlane.f32.xlu0 %v320
        %v322 = vpop.xlane.xlu0 %321
        %v323 = vsub.f32 %v319, %v322
        %v324 = vmul.f32 %v323, 1.442695
        %v325 = vpow.pop %v324
        %v326 = vsel %vm272, %v325, 0.0
        %327 = vadd.xlane.f32.xlu0 %v326
        %v328 = vpop.xlane.xlu0 %327
        %v329 = vrcp.pop %v328
        %v330 = vpack.c.bf16 %v325, %v325
        %331 = vrot.lane.b32.xlu0 %v263, 96
        %v332 = vpop.permute.xlu0 %331
        %v334 = vsel %vm272, %v330, 0
        %vm336 = vcmask 1043456
        %v338 = vsel %vm336, %v332, 0
        %340 = vmatprep.subr.bf16.mxu0 0
        %341 = vmatpush1.bf16.msra.mxu0 %v338
        %342 = vmatprep.subr.bf16.mxu0 0
        %343 = vmatpush1.bf16.msra.mxu0 0
        %344 = vmatprep.subr.bf16.mxu0 0
        %345 = vmatpush1.bf16.msra.mxu0 0
        %346 = vmatprep.subr.bf16.mxu0 0
        %347 = vmatpush1.bf16.msra.mxu0 0
        %348 = vmatprep.subr.bf16.mxu0 0
        %349 = vmatpush1.bf16.msra.mxu0 0
        %350 = vmatprep.subr.bf16.mxu0 0
        %351 = vmatpush1.bf16.msra.mxu0 0
        %352 = vmatprep.subr.bf16.mxu0 0
        %353 = vmatpush1.bf16.msra.mxu0 0
        %354 = vmatprep.subr.bf16.mxu0 0
        %355 = vmatpush1.bf16.msra.mxu0 0
        %356 = vmatprep.subr.bf16.mxu0 0
        %357 = vmatpush1.bf16.msra.mxu0 0
        %358 = vmatprep.subr.bf16.mxu0 0
        %359 = vmatpush1.bf16.msra.mxu0 0
        %360 = vmatprep.subr.bf16.mxu0 0
        %361 = vmatpush1.bf16.msra.mxu0 0
        %362 = vmatprep.subr.bf16.mxu0 0
        %363 = vmatpush1.bf16.msra.mxu0 0
        %364 = vmatprep.subr.bf16.mxu0 0
        %365 = vmatpush1.bf16.msra.mxu0 0
        %366 = vmatprep.subr.bf16.mxu0 0
        %367 = vmatpush1.bf16.msra.mxu0 0
        %368 = vmatprep.subr.bf16.mxu0 0
        %369 = vmatpush1.bf16.msra.mxu0 0
        %370 = vmatprep.subr.bf16.mxu0 0
        %371 = vmatpush1.bf16.msra.mxu0 0
        %372 = vmatprep.mubr.bf16.mxu0 0
        %373 = vmatmul.mubr.bf16.gmra.mrb[0].mxu0 %v334
        %v374 = vpop.f32.mrb[0].mxu0
        %v375 = vadd.f32 0.0, %v374
        %v376 = vpop.f32.mrb[0].mxu0
        %v377 = vpop.f32.mrb[0].mxu0
        %v378 = vpop.f32.mrb[0].mxu0
        %379 = vdwg.mxu0
        %v380 = vmul.f32 %v375, %v329
        %381 = vst.msk [vmem:[%s200] sm:$0xff] %vm272, %v380
        %382 = vrot.lane.b32.xlu0 %v263, 120
        %v383 = vpop.permute.xlu0 %382
        %384 = vrot.lane.b32.xlu0 %v263, 104
        %v385 = vpop.permute.xlu0 %384
        %v387 = vsel %vm272, %v383, 0
        %v390 = vsel %vm272, %v385, 0
        %392 = vmatprep.subr.bf16.mxu0 0
        %393 = vmatpush1.bf16.xpose.msra.mxu0 %v390
        %394 = vmatprep.subr.bf16.mxu0 0
        %395 = vmatpush1.bf16.xpose.msra.mxu0 0
        %396 = vmatprep.subr.bf16.mxu0 0
        %397 = vmatpush1.bf16.xpose.msra.mxu0 0
        %398 = vmatprep.subr.bf16.mxu0 0
        %399 = vmatpush1.bf16.xpose.msra.mxu0 0
        %400 = vmatprep.subr.bf16.mxu0 0
        %401 = vmatpush1.bf16.xpose.msra.mxu0 0
        %402 = vmatprep.subr.bf16.mxu0 0
        %403 = vmatpush1.bf16.xpose.msra.mxu0 0
        %404 = vmatprep.subr.bf16.mxu0 0
        %405 = vmatpush1.bf16.xpose.msra.mxu0 0
        %406 = vmatprep.subr.bf16.mxu0 0
        %407 = vmatpush1.bf16.xpose.msra.mxu0 0
        %408 = vmatprep.subr.bf16.mxu0 0
        %409 = vmatpush1.bf16.xpose.msra.mxu0 0
        %410 = vmatprep.subr.bf16.mxu0 0
        %411 = vmatpush1.bf16.xpose.msra.mxu0 0
        %412 = vmatprep.subr.bf16.mxu0 0
        %413 = vmatpush1.bf16.xpose.msra.mxu0 0
        %414 = vmatprep.subr.bf16.mxu0 0
        %415 = vmatpush1.bf16.xpose.msra.mxu0 0
        %416 = vmatprep.subr.bf16.mxu0 0
        %417 = vmatpush1.bf16.xpose.msra.mxu0 0
        %418 = vmatprep.subr.bf16.mxu0 0
        %419 = vmatpush1.bf16.xpose.msra.mxu0 0
        %420 = vmatprep.subr.bf16.mxu0 0
        %421 = vmatpush1.bf16.xpose.msra.mxu0 0
        %422 = vmatprep.subr.bf16.mxu0 0
        %423 = vmatpush1.bf16.xpose.msra.mxu0 0
        %424 = vmatprep.mubr.bf16.mxu0 0
        %425 = vmatmul.mubr.bf16.gmra.mrb[0].mxu0 %v387
        %v426 = vpop.f32.mrb[0].mxu0
        %v427 = vadd.f32 0.0, %v426
        %v428 = vpop.f32.mrb[0].mxu0
        %v429 = vpop.f32.mrb[0].mxu0
        %v430 = vpop.f32.mrb[0].mxu0
        %431 = vdwg.mxu0
        %v432 = vsel %vm268, %v427, -1e+30
        %v433 = vsel %vm272, %v432, -inf
        %434 = vmax.xlane.f32.xlu0 %v433
        %v435 = vpop.xlane.xlu0 %434
        %v436 = vsub.f32 %v432, %v435
        %v437 = vmul.f32 %v436, 1.442695
        %v438 = vpow.pop %v437
        %v439 = vsel %vm272, %v438, 0.0
        %440 = vadd.xlane.f32.xlu0 %v439
        %v441 = vpop.xlane.xlu0 %440
        %v442 = vrcp.pop %v441
        %v443 = vpack.c.bf16 %v438, %v438
        %444 = vrot.lane.b32.xlu0 %v263, 88
        %v445 = vpop.permute.xlu0 %444
        %v447 = vsel %vm272, %v443, 0
        %v450 = vsel %vm336, %v445, 0
        %452 = vmatprep.subr.bf16.mxu0 0
        %453 = vmatpush1.bf16.msra.mxu0 %v450
        %454 = vmatprep.subr.bf16.mxu0 0
        %455 = vmatpush1.bf16.msra.mxu0 0
        %456 = vmatprep.subr.bf16.mxu0 0
        %457 = vmatpush1.bf16.msra.mxu0 0
        %458 = vmatprep.subr.bf16.mxu0 0
        %459 = vmatpush1.bf16.msra.mxu0 0
        %460 = vmatprep.subr.bf16.mxu0 0
        %461 = vmatpush1.bf16.msra.mxu0 0
        %462 = vmatprep.subr.bf16.mxu0 0
        %463 = vmatpush1.bf16.msra.mxu0 0
        %464 = vmatprep.subr.bf16.mxu0 0
        %465 = vmatpush1.bf16.msra.mxu0 0
        %466 = vmatprep.subr.bf16.mxu0 0
        %467 = vmatpush1.bf16.msra.mxu0 0
        %468 = vmatprep.subr.bf16.mxu0 0
        %469 = vmatpush1.bf16.msra.mxu0 0
        %470 = vmatprep.subr.bf16.mxu0 0
        %471 = vmatpush1.bf16.msra.mxu0 0
        %472 = vmatprep.subr.bf16.mxu0 0
        %473 = vmatpush1.bf16.msra.mxu0 0
        %474 = vmatprep.subr.bf16.mxu0 0
        %475 = vmatpush1.bf16.msra.mxu0 0
        %476 = vmatprep.subr.bf16.mxu0 0
        %477 = vmatpush1.bf16.msra.mxu0 0
        %478 = vmatprep.subr.bf16.mxu0 0
        %479 = vmatpush1.bf16.msra.mxu0 0
        %480 = vmatprep.subr.bf16.mxu0 0
        %481 = vmatpush1.bf16.msra.mxu0 0
        %482 = vmatprep.subr.bf16.mxu0 0
        %483 = vmatpush1.bf16.msra.mxu0 0
        %484 = vmatprep.mubr.bf16.mxu0 0
        %485 = vmatmul.mubr.bf16.gmra.mrb[0].mxu0 %v447
        %v486 = vpop.f32.mrb[0].mxu0
        %v487 = vadd.f32 0.0, %v486
        %v488 = vpop.f32.mrb[0].mxu0
        %v489 = vpop.f32.mrb[0].mxu0
        %v490 = vpop.f32.mrb[0].mxu0
        %491 = vdwg.mxu0
        %v492 = vmul.f32 %v487, %v442
        %494 = vrot.lane.b32.xlu0 %v492, 8
        %v495 = vpop.permute.xlu0 %494
        %vm497 = vcmask 130112
        %498 = vst.msk [vmem:[%s200] sm:$0xff] %vm497, %v495
        %s499 = sand.u32 %s97, 1
        %s500 = scalar_lea.sflag [#allocation4], %s499
        %s501 = sand.u32 %s97, 1
        %s502 = smul.addr %s501, 8
        %s503 = scalar_lea.vmem [#allocation7], %s502
        // Predicated region
        $region41: #{tpu_custom_call.1} parent=31 // pred_check
          %p504 = pneg %p107
        $region42: #{tpu_custom_call.1} parent=31 // pred_check_branch
          %506 = sbr.rel (%p504) target = $region44
        $region43: #{tpu_custom_call.1} parent=31 // pred_region
          %s508 = ssub.s32 128, 128
          %509 = vsyncadd %s500, %s508
          %s510 = smul.addr %s21, 128
          %s511 = scalar_lea.hbm %s3, %s510
          %s513 = sshll.u32 %s503, 4
          %s514 = int_to_ptr.vmem [resolvable:$true] %s513
          %516 = dma.vmem_to_hbm [thread:$0]  %s514, 128, %s511, %s500
        $region44: #{tpu_custom_call.1} parent=31 // pred_fallthru
          _
      $region32: #{tpu_custom_call.1} parent=5 // pred_fallthru
        _
      %p517 = scmp.le.s32.totalorder 2, %s16
      // Predicated region
      $region45: #{tpu_custom_call.1} parent=5 // pred_check
        %p518 = pneg %p517
      $region46: #{tpu_custom_call.1} parent=5 // pred_check_branch
        %520 = sbr.rel (%p518) target = $region48
      $region47: #{tpu_custom_call.1} parent=5 // pred_region
        %s521 = ssub.s32 %s16, 2
        // Predicated region
        $region49: #{tpu_custom_call.1} parent=47 // pred_check
          %p522 = pneg %p113
        $region50: #{tpu_custom_call.1} parent=47 // pred_check_branch
          %524 = sbr.rel (%p522) target = $region52
        $region51: #{tpu_custom_call.1} parent=47 // pred_region
          %s525 = sand.u32 %s98, 1
          %s526 = scalar_lea.sflag [#allocation4], %s525
          %s527 = sand.u32 %s98, 1
          %s528 = smul.addr %s527, 8
          %s529 = scalar_lea.vmem [#allocation7], %s528
          %530 = dma.done %s526, 128
        $region52: #{tpu_custom_call.1} parent=47 // pred_fallthru
          _
      $region48: #{tpu_custom_call.1} parent=5 // pred_fallthru
        _
    $region6: #{tpu_custom_call.1} parent=1 // loop_footer
      %s20 = sadd.s32 1, %s16
    $region7: #{tpu_custom_call.1} parent=1 // loop_footer_branch
      %15 = sbr.rel target = $region3
    $region8: #{tpu_custom_call.1} parent=1 // loop_exit
      _
    %531 = vsyncpa [#allocation3], 1
    %s532 = scalar_lea.sflag [#allocation3], 1
    %533 = vsyncpa %s532, 1
    %534 = vsyncpa [#allocation6], 1
    %535 = vsyncpa [#allocation4], 1
    %s536 = scalar_lea.sflag [#allocation4], 1
    %537 = vsyncpa %s536, 1

</llo_original>
